<compile_context>
chip_gen: v7x
topology: tpu7x:2x2x1
jax: 0.10.0
libtpu: 0.0.40
codegen_flags: <defaults>
</compile_context>

<pallas_src>
import jax
import jax.numpy as jnp
from jax.experimental import pallas as pl
from jax.experimental.pallas import tpu as pltpu


def _round_up(a, b):
    return (a + b - 1) // b * b


def _scse_kernel(x_ref, gate_ref, wc_ref, o_ref):
    # x_ref:    (1, C, R, 128)  one spatial tile of one batch element
    # gate_ref: (1, C, 1, 1)    precomputed cSE gate for this batch element
    # wc_ref:   (C, 1, 1)       1x1-conv (spatial squeeze) weights
    x = x_ref[0]                     # (C, R, 128)  f32/bf16
    gate = gate_ref[0]               # (C, 1, 1)
    wc = wc_ref[...]                 # (C, 1, 1)

    # sSE: per-pixel channel reduction (VPU mul + adds over the major axis),
    # then sigmoid on the EUP.  No MXU involvement.
    sse = jax.nn.sigmoid(jnp.sum(x * wc, axis=0, keepdims=True))   # (1, R, 128)

    # x * cSE + x * sSE == x * (cSE + sSE)
    o_ref[0] = (x * (gate + sse)).astype(o_ref.dtype)


def scse_forward(x_nchw, w1, b1, w2, b2, wconv):
    """x_nchw: (B, C, H, W).  Params in torch shapes:
       w1 (L, C), b1 (L,), w2 (C, L), b2 (C,), wconv (1, C, 1, 1)."""
    B, C, H, W = x_nchw.shape
    HW = H * W
    dtype = x_nchw.dtype

    # ---- cSE gate: tiny (B*C values), computed once in plain JAX ----------
    channel_mean = jnp.mean(x_nchw.astype(jnp.float32), axis=(2, 3))     # (B, C)
    h1 = jax.nn.relu(channel_mean @ w1.T + b1)                           # (B, L)
    gate = jax.nn.sigmoid(h1 @ w2.T + b2)                                # (B, C)
    gate = gate.reshape(B, C, 1, 1).astype(jnp.float32)

    wc = wconv.reshape(C, 1, 1).astype(jnp.float32)

    # ---- spatial tiling: lane-dense (128) last dim, sublane-dense rows ----
    LANES = 128
    SUBLANES = 8
    total_rows = _round_up(HW, LANES) // LANES

    # ~2 MiB per x block (f32): rows per tile, multiple of 8.
    r_budget = max(SUBLANES, ((2 << 20) // (4 * C * LANES)) // SUBLANES * SUBLANES)
    if total_rows <= r_budget:
        rows_tile = total_rows           # single row-tile; equals full dim -> ok
        rows_pad = total_rows
    else:
        rows_tile = r_budget
        rows_pad = _round_up(total_rows, rows_tile)
    HW_pad = rows_pad * LANES

    x = x_nchw.reshape(B, C, HW)
    if HW_pad != HW:
        # Zero-pad spatial so every output store is lane-dense & unmasked.
        x = jnp.pad(x, ((0, 0), (0, 0), (0, HW_pad - HW)))
    x = x.reshape(B, C, rows_pad, LANES)

    grid = (B, rows_pad // rows_tile)

    out = pl.pallas_call(
        _scse_kernel,
        out_shape=jax.ShapeDtypeStruct((B, C, rows_pad, LANES), dtype),
        grid_spec=pltpu.PrefetchScalarGridSpec(
            num_scalar_prefetch=0,
            grid=grid,
            in_specs=[
                pl.BlockSpec((1, C, rows_tile, LANES), lambda b, t: (b, 0, t, 0)),
                pl.BlockSpec((1, C, 1, 1), lambda b, t: (b, 0, 0, 0)),
                pl.BlockSpec((C, 1, 1), lambda b, t: (0, 0, 0)),
            ],
            out_specs=pl.BlockSpec((1, C, rows_tile, LANES), lambda b, t: (b, 0, t, 0)),
        ),
        compiler_params=pltpu.CompilerParams(
            dimension_semantics=("parallel", "parallel"),
            vmem_limit_bytes=32 * 1024 * 1024,
        ),
        cost_estimate=pl.CostEstimate(
            flops=4 * B * C * HW_pad,
            transcendentals=B * HW_pad,
            bytes_accessed=2 * B * C * HW_pad * 4,
        ),
    )(x, gate, wc)

    out = out.reshape(B, C, HW_pad)[:, :, :HW]
    return out.reshape(B, C, H, W)


def scse_reference(x, w1, b1, w2, b2, wconv):
    """Pure-JAX reference matching the PyTorch forward."""
    B, C, H, W = x.shape
    channel = jnp.mean(x, axis=(2, 3))                              # (B, C)
    h1 = jax.nn.relu(channel @ w1.T + b1)                           # (B, L)
    cse = jax.nn.sigmoid(h1 @ w2.T + b2).reshape(B, C, 1, 1)        # (B, C, 1, 1)
    sse = jax.nn.sigmoid(
        jnp.einsum("bchw,c->bhw", x, wconv.reshape(-1)))[:, None]   # (B, 1, H, W)
    return x * cse + x * sse


if __name__ == "__main__":
    # Shapes consistent with the module: in_channel=4, reduction=16
    # => linear_nodes = max(4 // 16, 4) = 4.
    B, C, H, W = 2, 4, 16, 16
    L = max(C // 16, 4)

    key = jax.random.PRNGKey(0)
    kx, k1, k2, k3, k4, k5 = jax.random.split(key, 6)

    x = jax.random.normal(kx, (B, C, H, W), dtype=jnp.float32)
    # Deterministic synthetic parameters (torch layout shapes).
    w1 = jax.random.normal(k1, (L, C), dtype=jnp.float32) * 0.3     # Linear(C -> L).weight
    b1 = jax.random.normal(k2, (L,), dtype=jnp.float32) * 0.1
    w2 = jax.random.normal(k3, (C, L), dtype=jnp.float32) * 0.3     # Linear(L -> C).weight
    b2 = jax.random.normal(k4, (C,), dtype=jnp.float32) * 0.1
    wconv = jax.random.normal(k5, (1, C, 1, 1), dtype=jnp.float32) * 0.3  # Conv2d(C,1,1).weight

    out = scse_forward(x, w1, b1, w2, b2, wconv)
    out = jax.block_until_ready(out)

    ref = scse_reference(x, w1, b1, w2, b2, wconv)
    assert out.shape == (B, C, H, W)
    assert jnp.allclose(out, ref, atol=1e-5, rtol=1e-5), "mismatch vs reference"

    print("KERNEL_OK")
</pallas_src>

<mosaic_0001>
module attributes {stable_mosaic.version = 11 : i64} {
  func.func @_scse_kernel(%arg0: i32, %arg1: i32, %arg2: memref<1x4x2x128xf32, #tpu.memory_space<vmem>>, %arg3: memref<1x4x1x1xf32, #tpu.memory_space<vmem>>, %arg4: memref<4x1x1xf32, #tpu.memory_space<vmem>>, %arg5: memref<1x4x2x128xf32, #tpu.memory_space<vmem>>) attributes {dimension_semantics = [#tpu.dimension_semantics<parallel>, #tpu.dimension_semantics<parallel>], iteration_bounds = array<i64: 2, 1>, scalar_prefetch = 0 : i64, scratch_operands = 0 : i64, tpu.core_type = #tpu.core_type<tc>, window_params = [{transform_indices = @transform_0, window_bounds = array<i64: 1, 4, 2, 128>}, {transform_indices = @transform_1, window_bounds = array<i64: 1, 4, 1, 1>}, {pipeline_mode = #tpu.pipeline_mode<synchronous>, transform_indices = @transform_2, window_bounds = array<i64: 4, 1, 1>}, {transform_indices = @transform_3, window_bounds = array<i64: 1, 4, 2, 128>}]} {
    %c0 = arith.constant 0 : index
    %c0_0 = arith.constant 0 : index
    %c0_1 = arith.constant 0 : index
    %c0_2 = arith.constant 0 : index
    %0 = vector.load %arg2[%c0, %c0_0, %c0_1, %c0_2] : memref<1x4x2x128xf32, #tpu.memory_space<vmem>>, vector<1x4x2x128xf32>
    %1 = vector.shape_cast %0 : vector<1x4x2x128xf32> to vector<4x2x128xf32>
    %c0_3 = arith.constant 0 : index
    %c0_4 = arith.constant 0 : index
    %c0_5 = arith.constant 0 : index
    %c0_6 = arith.constant 0 : index
    %2 = vector.load %arg3[%c0_3, %c0_4, %c0_5, %c0_6] : memref<1x4x1x1xf32, #tpu.memory_space<vmem>>, vector<1x4x1x1xf32>
    %3 = vector.shape_cast %2 : vector<1x4x1x1xf32> to vector<4x1x1xf32>
    %c0_7 = arith.constant 0 : index
    %c0_8 = arith.constant 0 : index
    %c0_9 = arith.constant 0 : index
    %4 = vector.load %arg4[%c0_7, %c0_8, %c0_9] : memref<4x1x1xf32, #tpu.memory_space<vmem>>, vector<4x1x1xf32>
    %5 = vector.broadcast %4 : vector<4x1x1xf32> to vector<4x2x128xf32>
    %6 = arith.mulf %1, %5 : vector<4x2x128xf32>
    %cst = arith.constant dense<0.000000e+00> : vector<2x128xf32>
    %7 = vector.multi_reduction <add>, %6, %cst [0] : vector<4x2x128xf32> to vector<2x128xf32>
    %8 = vector.shape_cast %7 : vector<2x128xf32> to vector<1x2x128xf32>
    %9 = arith.negf %8 : vector<1x2x128xf32>
    %10 = math.exp %9 : vector<1x2x128xf32>
    %cst_10 = arith.constant 1.000000e+00 : f32
    %11 = vector.broadcast %cst_10 : f32 to vector<1x2x128xf32>
    %12 = arith.addf %11, %10 : vector<1x2x128xf32>
    %13 = arith.divf %11, %12 : vector<1x2x128xf32>
    %14 = vector.broadcast %3 : vector<4x1x1xf32> to vector<4x2x128xf32>
    %15 = vector.broadcast %13 : vector<1x2x128xf32> to vector<4x2x128xf32>
    %16 = arith.addf %14, %15 : vector<4x2x128xf32>
    %17 = arith.mulf %1, %16 : vector<4x2x128xf32>
    %c0_11 = arith.constant 0 : index
    %c0_12 = arith.constant 0 : index
    %c0_13 = arith.constant 0 : index
    %c0_14 = arith.constant 0 : index
    %18 = vector.load %arg5[%c0_11, %c0_12, %c0_13, %c0_14] : memref<1x4x2x128xf32, #tpu.memory_space<vmem>>, vector<1x4x2x128xf32>
    %19 = vector.shape_cast %18 : vector<1x4x2x128xf32> to vector<4x2x128xf32>
    %20 = vector.shape_cast %17 : vector<4x2x128xf32> to vector<1x4x2x128xf32>
    tpu.vector_store %arg5[%c0_11, %c0_12, %c0_13, %c0_14], %20 {strides = array<i32>} : memref<1x4x2x128xf32, #tpu.memory_space<vmem>>, vector<1x4x2x128xf32>,
    return
  }
  func.func @transform_0(%arg0: i32, %arg1: i32) -> (i32, i32, i32, i32) {
    %c0_i32 = arith.constant 0 : i32
    %c0_i32_0 = arith.constant 0 : i32
    %c0_i32_1 = arith.constant 0 : i32
    return %arg0, %c0_i32, %arg1, %c0_i32_0 : i32, i32, i32, i32
  }
  func.func @transform_1(%arg0: i32, %arg1: i32) -> (i32, i32, i32, i32) {
    %c0_i32 = arith.constant 0 : i32
    %c0_i32_0 = arith.constant 0 : i32
    %c0_i32_1 = arith.constant 0 : i32
    %c0_i32_2 = arith.constant 0 : i32
    return %arg0, %c0_i32, %c0_i32_0, %c0_i32_1 : i32, i32, i32, i32
  }
  func.func @transform_2(%arg0: i32, %arg1: i32) -> (i32, i32, i32) {
    %c0_i32 = arith.constant 0 : i32
    %c0_i32_0 = arith.constant 0 : i32
    %c0_i32_1 = arith.constant 0 : i32
    %c0_i32_2 = arith.constant 0 : i32
    return %c0_i32, %c0_i32_0, %c0_i32_1 : i32, i32, i32
  }
  func.func @transform_3(%arg0: i32, %arg1: i32) -> (i32, i32, i32, i32) {
    %c0_i32 = arith.constant 0 : i32
    %c0_i32_0 = arith.constant 0 : i32
    %c0_i32_1 = arith.constant 0 : i32
    return %arg0, %c0_i32, %arg1, %c0_i32_0 : i32, i32, i32, i32
  }
}

</mosaic_0001>

<llo_original>
// kernel: tpu_custom_call.1
$region0: #{tpu_custom_call.1}
  #allocation0 [shape = 'u32[]', space=smem, size = 0x4, offset = 0x4, fixed_abs, tag = 'smem constant byte address 0x4 - core index']
  #allocation1 [shape = 'u32[144,128]{1,0:T(1,128)}', space=vmem, size = 0x12000, scoped, tag = 'internal scratch']
  %s0 = inlined_call_operand.hbm [shape: f32[2,4,2,128], index: 0, kind: input, shape index: {}]
  %s1 = inlined_call_operand.vmem [shape: f32[2,4,1,1], index: 1, kind: input, shape index: {}]
  %s2 = inlined_call_operand.vmem [shape: f32[4,1,1], index: 2, kind: input, shape index: {}]
  %s3 = inlined_call_operand.hbm [shape: f32[2,4,2,128], index: 3, kind: output, shape index: {}]
  %s4 = sld [smem:[#allocation0]]
  $region49: #{tpu_custom_call.1} parent=0
    _
  %s6 = ssub.s32 1, %s4
  %s7 = scalar_select 0, %s6, %s4
  $region1: #{tpu_custom_call.1} parent=0
    #allocation2 [shape = 'u8[8192]{0}', space=vmem, size = 0x2000, scoped, tag = 'input window, operand 0']
    #allocation3 [shape = 's32[2]{0}', space=sflag, size = 0x8, scoped, tag = 'scoped memory for tpu_custom_call.1']
    #allocation4 [shape = 's32[2]{0}', space=sflag, size = 0x8, scoped, tag = 'scoped memory for tpu_custom_call.1']
    #allocation5 [shape = 'u8[8192]{0}', space=vmem, size = 0x2000, scoped, tag = 'output window, operand 0']
    %8 = vsyncpa [#allocation3], 0
    %s9 = scalar_lea.sflag [#allocation3], 1
    %10 = vsyncpa %s9, 0
    %11 = vsyncpa [#allocation4], 0
    %s12 = scalar_lea.sflag [#allocation4], 1
    %13 = vsyncpa %s12, 0
    loop: start=0, step=1, limit=4
    $region2: #{tpu_custom_call.1} parent=1 // loop_pre_header
      _
    $region3: #{tpu_custom_call.1} parent=1 // loop_header
      %s15 = sphi 0, %s19
      %p16 = scmp.ge.s32.totalorder %s15, 4
      %s22 = sphi 0, %s34
      %s23 = sphi 0, %s30
      %s24 = sphi 0, %s22
      %s25 = sphi 0, %s23
      %s26 = sphi 0, %s24
      %s27 = sphi 0, %s25
      %s39 = sphi 0, %s41
      %s42 = sphi 0, %s39
      %s43 = sphi 0, %s42
      %s59 = sphi 0, %s43
      %s65 = sphi 0, %s67
      %s68 = sphi 0, %s65
      %s69 = sphi 0, %s68
      %s85 = sphi 0, %s69
      %s89 = sphi 0, %s89
      %s91 = sphi 0, %s89
      %s92 = sphi 0, %s91
      %s106 = sphi 0, %s92
      %s114 = sphi 0, %s116
      %s117 = sphi 0, %s114
      %s118 = sphi 0, %s117
      %s134 = sphi 0, %s118
    $region4: #{tpu_custom_call.1} parent=1 // loop_header_branch
      %18 = sbr.rel (%p16) target = $region8
    $region5: #{tpu_custom_call.1} parent=1 // loop_body
      %s20 = ssub.s32 %s15, 1
      %s21 = ssub.s32 %s15, 2
      %s28 = sadd.s32 1, %s23
      %p29 = scmp.ge.s32.totalorder %s28, 1
      %s30 = scalar_select %p29, 0, %s28
      %s31 = sadd.s32 1, %s22
      %s32 = scalar_select %p29, %s31, %s22
      %p33 = scmp.ge.s32.totalorder %s32, 2
      %s34 = scalar_select %p33, 0, %s32
      %s35 = ssub.s32 %s22, %s34
      %s36 = ssub.s32 %s23, %s30
      %s37 = sor.u32 %s35, %s36
      %p38 = scmp.eq.s32.totalorder %s37, 0
      %s40 = sadd.s32 %s39, 1
      %s41 = scalar_select %p38, %s39, %s40
      %p44 = pneg %p38
      %p45 = scmp.eq.s32.totalorder %s15, 1
      %p46 = por %p44, %p45
      %p47 = scmp.ne.s32.totalorder %s39, %s42
      %p48 = scmp.eq.s32.totalorder %s15, 0
      %p49 = por %p47, %p48
      %p50 = scmp.ne.s32.totalorder %s39, %s42
      %p51 = scmp.eq.s32.totalorder %s20, 1
      %p52 = por %p50, %p51
      %p53 = scmp.ne.s32.totalorder %s42, %s43
      %p54 = scmp.eq.s32.totalorder %s20, 0
      %p55 = por %p53, %p54
      %p56 = scmp.ne.s32.totalorder %s42, %s43
      %p57 = scmp.eq.s32.totalorder %s21, 1
      %p58 = por %p56, %p57
      %p60 = scmp.ne.s32.totalorder %s43, %s59
      %p61 = scmp.eq.s32.totalorder %s21, 0
      %p62 = por %p60, %p61
      %s63 = ssub.s32 %s22, %s34
      %p64 = scmp.eq.s32.totalorder %s63, 0
      %s66 = sadd.s32 %s65, 1
      %s67 = scalar_select %p64, %s65, %s66
      %p70 = pneg %p64
      %p71 = scmp.eq.s32.totalorder %s15, 1
      %p72 = por %p70, %p71
      %p73 = scmp.ne.s32.totalorder %s65, %s68
      %p74 = scmp.eq.s32.totalorder %s15, 0
      %p75 = por %p73, %p74
      %p76 = scmp.ne.s32.totalorder %s65, %s68
      %p77 = scmp.eq.s32.totalorder %s20, 1
      %p78 = por %p76, %p77
      %p79 = scmp.ne.s32.totalorder %s68, %s69
      %p80 = scmp.eq.s32.totalorder %s20, 0
      %p81 = por %p79, %p80
      %p82 = scmp.ne.s32.totalorder %s68, %s69
      %p83 = scmp.eq.s32.totalorder %s21, 1
      %p84 = por %p82, %p83
      %p86 = scmp.ne.s32.totalorder %s69, %s85
      %p87 = scmp.eq.s32.totalorder %s21, 0
      %p88 = por %p86, %p87
      %s90 = sadd.s32 %s89, 1
      %p93 = scmp.eq.s32.totalorder %s15, 1
      %p94 = scmp.ne.s32.totalorder %s89, %s91
      %p95 = scmp.eq.s32.totalorder %s15, 0
      %p96 = por %p94, %p95
      %p97 = scmp.ne.s32.totalorder %s89, %s91
      %p98 = scmp.eq.s32.totalorder %s20, 1
      %p99 = por %p97, %p98
      %p100 = scmp.ne.s32.totalorder %s91, %s92
      %p101 = scmp.eq.s32.totalorder %s20, 0
      %p102 = por %p100, %p101
      %p103 = scmp.ne.s32.totalorder %s91, %s92
      %p104 = scmp.eq.s32.totalorder %s21, 1
      %p105 = por %p103, %p104
      %p107 = scmp.ne.s32.totalorder %s92, %s106
      %p108 = scmp.eq.s32.totalorder %s21, 0
      %p109 = por %p107, %p108
      %s110 = ssub.s32 %s22, %s34
      %s111 = ssub.s32 %s23, %s30
      %s112 = sor.u32 %s110, %s111
      %p113 = scmp.eq.s32.totalorder %s112, 0
      %s115 = sadd.s32 %s114, 1
      %s116 = scalar_select %p113, %s114, %s115
      %p119 = pneg %p113
      %p120 = scmp.eq.s32.totalorder %s15, 1
      %p121 = por %p119, %p120
      %p122 = scmp.ne.s32.totalorder %s114, %s117
      %p123 = scmp.eq.s32.totalorder %s15, 0
      %p124 = por %p122, %p123
      %p125 = scmp.ne.s32.totalorder %s114, %s117
      %p126 = scmp.eq.s32.totalorder %s20, 1
      %p127 = por %p125, %p126
      %p128 = scmp.ne.s32.totalorder %s117, %s118
      %p129 = scmp.eq.s32.totalorder %s20, 0
      %p130 = por %p128, %p129
      %p131 = scmp.ne.s32.totalorder %s117, %s118
      %p132 = scmp.eq.s32.totalorder %s21, 1
      %p133 = por %p131, %p132
      %p135 = scmp.ne.s32.totalorder %s118, %s134
      %p136 = scmp.eq.s32.totalorder %s21, 0
      %p137 = por %p135, %p136
      %p138 = scmp.le.s32.totalorder 1, %s15
      %p139 = scmp.lt.s32.totalorder %s15, 3
      %p140 = pnand %p138, %p139
      %p141 = pneg %p140
      // Predicated region
      $region9: #{tpu_custom_call.1} parent=5 // pred_check
        _
      $region10: #{tpu_custom_call.1} parent=5 // pred_check_branch
        %143 = sbr.rel (%p140) target = $region12
      $region11: #{tpu_custom_call.1} parent=5 // pred_region
        %s144 = ssub.s32 %s15, 1
        // Predicated region
        $region13: #{tpu_custom_call.1} parent=11 // pred_check
          %p145 = pneg %p102
        $region14: #{tpu_custom_call.1} parent=11 // pred_check_branch
          %147 = sbr.rel (%p145) target = $region16
        $region15: #{tpu_custom_call.1} parent=11 // pred_region
          _
        $region16: #{tpu_custom_call.1} parent=11 // pred_fallthru
          _
      $region12: #{tpu_custom_call.1} parent=5 // pred_fallthru
        _
      %p148 = scmp.lt.s32.totalorder %s15, 2
      // Predicated region
      $region17: #{tpu_custom_call.1} parent=5 // pred_check
        %p149 = pneg %p148
      $region18: #{tpu_custom_call.1} parent=5 // pred_check_branch
        %151 = sbr.rel (%p149) target = $region20
      $region19: #{tpu_custom_call.1} parent=5 // pred_region
        // Predicated region
        $region21: #{tpu_custom_call.1} parent=19 // pred_check
          %p152 = pneg %p49
        $region22: #{tpu_custom_call.1} parent=19 // pred_check_branch
          %154 = sbr.rel (%p152) target = $region24
        $region23: #{tpu_custom_call.1} parent=19 // pred_region
          %s155 = sand.u32 %s39, 1
          %s156 = scalar_lea.sflag [#allocation3], %s155
          %s157 = sand.u32 %s39, 1
          %s158 = smul.addr %s157, 8
          %s159 = scalar_lea.vmem [#allocation2], %s158
          %s161 = ssub.s32 128, 128
          %162 = vsyncadd %s156, %s161
          %s163 = smul.addr %s22, 4
          %s164 = sadd.s32 %s23, %s163
          %s165 = smul.addr %s164, 32
          %s166 = scalar_lea.hbm %s0, %s165
          %s167 = sshll.u32 %s159, 4
          %s168 = int_to_ptr.vmem [resolvable:$true] %s167
          %173 = dma.hbm_to_vmem [thread:$0]  %s166, 128, %s168, %s156, 32, 32, 2
        $region24: #{tpu_custom_call.1} parent=19 // pred_fallthru
          _
        // Predicated region
        $region25: #{tpu_custom_call.1} parent=19 // pred_check
          %p174 = pneg %p75
        $region26: #{tpu_custom_call.1} parent=19 // pred_check_branch
          %176 = sbr.rel (%p174) target = $region28
        $region27: #{tpu_custom_call.1} parent=19 // pred_region
          %p177 = scmp.lt.s32.totalorder %s22, 1
          %s178 = scalar_select %p177, %s22, 1
          %s179 = smul.addr %s178, 4
          %s180 = scalar_lea.vmem %s1, %s179
        $region28: #{tpu_custom_call.1} parent=19 // pred_fallthru
          _
      $region20: #{tpu_custom_call.1} parent=5 // pred_fallthru
        _
      %p181 = scmp.le.s32.totalorder 1, %s15
      %p182 = scmp.lt.s32.totalorder %s15, 3
      %p183 = pnand %p181, %p182
      %p184 = pneg %p183
      // Predicated region
      $region29: #{tpu_custom_call.1} parent=5 // pred_check
        _
      $region30: #{tpu_custom_call.1} parent=5 // pred_check_branch
        %186 = sbr.rel (%p183) target = $region32
      $region31: #{tpu_custom_call.1} parent=5 // pred_region
        %s187 = ssub.s32 %s15, 1
        %s188 = sand.u32 %s42, 1
        %s189 = scalar_lea.sflag [#allocation3], %s188
        %s190 = sand.u32 %s42, 1
        %s191 = smul.addr %s190, 8
        %s192 = scalar_lea.vmem [#allocation2], %s191
        // Predicated region
        $region33: #{tpu_custom_call.1} parent=31 // pred_check
          %p193 = pneg %p55
        $region34: #{tpu_custom_call.1} parent=31 // pred_check_branch
          %195 = sbr.rel (%p193) target = $region36
        $region35: #{tpu_custom_call.1} parent=31 // pred_region
          %196 = dma.done %s189, 128
        $region36: #{tpu_custom_call.1} parent=31 // pred_fallthru
          _
        %s197 = sand.u32 %s42, 1
        %s198 = scalar_lea.sflag [#allocation3], %s197
        %s199 = sand.u32 %s42, 1
        %s200 = smul.addr %s199, 8
        %s201 = scalar_lea.vmem [#allocation2], %s200
        %p202 = pneg %p55
        %p203 = pneg %p52
        %p204 = scmp.lt.s32.totalorder %s24, 1
        %s205 = scalar_select %p204, %s24, 1
        %s206 = smul.addr %s205, 4
        %s207 = scalar_lea.vmem %s1, %s206
        %p208 = pneg %p81
        %p209 = pneg %p78
        %p210 = pneg %p102
        %p211 = pneg %p99
        %p212 = pneg %p130
        %p213 = pneg %p127
        %s214 = sand.u32 %s117, 1
        %s215 = scalar_lea.sflag [#allocation4], %s214
        %s216 = sand.u32 %s117, 1
        %s217 = smul.addr %s216, 8
        %s218 = scalar_lea.vmem [#allocation5], %s217
        %p219 = scmp.lt.s32.totalorder %s24, 1
        %s220 = scalar_select %p219, %s24, 1
        %s221 = smul.addr %s220, 4
        %s222 = scalar_lea.vmem %s1, %s221
        %v223 = vld [vmem:[%s192] sm:$0x3]
        %v224 = vld [vmem:[%s192 + $0x2] sm:$0x3]
        %v225 = vld [vmem:[%s192 + $0x4] sm:$0x3]
        %v226 = vld [vmem:[%s192 + $0x6] sm:$0x3]
        %v227 = vld [vmem:[%s222] sm:$0x1]
        %v228 = vld [vmem:[%s222 + $0x1] sm:$0x1]
        %v229 = vld [vmem:[%s222 + $0x2] sm:$0x1]
        %v230 = vld [vmem:[%s222 + $0x3] sm:$0x1]
        %v231 = vld [vmem:[%s2] sm:$0x1]
        %v232 = vld [vmem:[%s2 + $0x1] sm:$0x1]
        %v233 = vld [vmem:[%s2 + $0x2] sm:$0x1]
        %v234 = vld [vmem:[%s2 + $0x3] sm:$0x1]
        %v239 = vlaneseq
        %v240 = vshrl.u32 %v239, 7
        %v241 = vsub.s32 0, %v240
        %v242 = vrot.slane %v231, %v241
        %v243 = vlaneseq
        %v244 = vshrl.u32 %v243, 7
        %v245 = vsub.s32 0, %v244
        %v246 = vrot.slane %v232, %v245
        %v247 = vlaneseq
        %v248 = vshrl.u32 %v247, 7
        %v249 = vsub.s32 0, %v248
        %v250 = vrot.slane %v233, %v249
        %v251 = vlaneseq
        %v252 = vshrl.u32 %v251, 7
        %v253 = vsub.s32 0, %v252
        %v254 = vrot.slane %v234, %v253
        %255 = vset.pattern.permute.xlu0 0
        %256 = vperm.xlu0 %255, %v242
        %v257 = vpop.permute.xlu0 %256
        %259 = vset.pattern.permute.xlu0 0
        %260 = vperm.xlu0 %259, %v246
        %v261 = vpop.permute.xlu0 %260
        %263 = vset.pattern.permute.xlu0 0
        %264 = vperm.xlu0 %263, %v250
        %v265 = vpop.permute.xlu0 %264
        %267 = vset.pattern.permute.xlu0 0
        %268 = vperm.xlu0 %267, %v254
        %v269 = vpop.permute.xlu0 %268
        %v271 = vmul.f32 %v223, %v257
        %v272 = vmul.f32 %v224, %v261
        %v273 = vmul.f32 %v225, %v265
        %v274 = vmul.f32 %v226, %v269
        %vm275 = vcmask 1041408
        %v276 = vsel %vm275, %v271, 0.0
        %v277 = vsel %vm275, %v272, 0.0
        %v278 = vadd.f32 %v276, %v277
        %v279 = vsel %vm275, %v273, 0.0
        %v280 = vadd.f32 %v278, %v279
        %v281 = vsel %vm275, %v274, 0.0
        %v282 = vadd.f32 %v280, %v281
        %v283 = vxor.u32 %v282, 2147483648
        %v284 = vmul.f32 %v283, 1.442695
        %v285 = vpow.pop %v284
        %v286 = vadd.f32 %v285, 1.0
        %v287 = vrcp.pop %v286
        %v288 = vmul.f32 1.0, %v287
        %v293 = vlaneseq
        %v294 = vshrl.u32 %v293, 7
        %v295 = vsub.s32 0, %v294
        %v296 = vrot.slane %v227, %v295
        %v297 = vlaneseq
        %v298 = vshrl.u32 %v297, 7
        %v299 = vsub.s32 0, %v298
        %v300 = vrot.slane %v228, %v299
        %v301 = vlaneseq
        %v302 = vshrl.u32 %v301, 7
        %v303 = vsub.s32 0, %v302
        %v304 = vrot.slane %v229, %v303
        %v305 = vlaneseq
        %v306 = vshrl.u32 %v305, 7
        %v307 = vsub.s32 0, %v306
        %v308 = vrot.slane %v230, %v307
        %309 = vset.pattern.permute.xlu0 0
        %310 = vperm.xlu0 %309, %v296
        %v311 = vpop.permute.xlu0 %310
        %313 = vset.pattern.permute.xlu0 0
        %314 = vperm.xlu0 %313, %v300
        %v315 = vpop.permute.xlu0 %314
        %317 = vset.pattern.permute.xlu0 0
        %318 = vperm.xlu0 %317, %v304
        %v319 = vpop.permute.xlu0 %318
        %321 = vset.pattern.permute.xlu0 0
        %322 = vperm.xlu0 %321, %v308
        %v323 = vpop.permute.xlu0 %322
        %v325 = vadd.f32 %v311, %v288
        %v326 = vadd.f32 %v315, %v288
        %v327 = vadd.f32 %v319, %v288
        %v328 = vadd.f32 %v323, %v288
        %v329 = vmul.f32 %v223, %v325
        %v330 = vmul.f32 %v224, %v326
        %v331 = vmul.f32 %v225, %v327
        %v332 = vmul.f32 %v226, %v328
        %333 = vst [vmem:[%s218] sm:$0x3] %v329
        %334 = vst [vmem:[%s218 + $0x2] sm:$0x3] %v330
        %335 = vst [vmem:[%s218 + $0x4] sm:$0x3] %v331
        %336 = vst [vmem:[%s218 + $0x6] sm:$0x3] %v332
        %s337 = sand.u32 %s117, 1
        %s338 = scalar_lea.sflag [#allocation4], %s337
        %s339 = sand.u32 %s117, 1
        %s340 = smul.addr %s339, 8
        %s341 = scalar_lea.vmem [#allocation5], %s340
        // Predicated region
        $region37: #{tpu_custom_call.1} parent=31 // pred_check
          %p342 = pneg %p127
        $region38: #{tpu_custom_call.1} parent=31 // pred_check_branch
          %344 = sbr.rel (%p342) target = $region40
        $region39: #{tpu_custom_call.1} parent=31 // pred_region
          %s346 = ssub.s32 128, 128
          %347 = vsyncadd %s338, %s346
          %s348 = smul.addr %s24, 4
          %s349 = sadd.s32 %s25, %s348
          %s350 = smul.addr %s349, 32
          %s351 = scalar_lea.hbm %s3, %s350
          %s352 = sshll.u32 %s341, 4
          %s353 = int_to_ptr.vmem [resolvable:$true] %s352
          %358 = dma.vmem_to_hbm [thread:$0]  %s353, 128, %s351, %s338, 32, 32, 2
        $region40: #{tpu_custom_call.1} parent=31 // pred_fallthru
          _
      $region32: #{tpu_custom_call.1} parent=5 // pred_fallthru
        _
      %p359 = scmp.le.s32.totalorder 2, %s15
      // Predicated region
      $region41: #{tpu_custom_call.1} parent=5 // pred_check
        %p360 = pneg %p359
      $region42: #{tpu_custom_call.1} parent=5 // pred_check_branch
        %362 = sbr.rel (%p360) target = $region44
      $region43: #{tpu_custom_call.1} parent=5 // pred_region
        %s363 = ssub.s32 %s15, 2
        // Predicated region
        $region45: #{tpu_custom_call.1} parent=43 // pred_check
          %p364 = pneg %p133
        $region46: #{tpu_custom_call.1} parent=43 // pred_check_branch
          %366 = sbr.rel (%p364) target = $region48
        $region47: #{tpu_custom_call.1} parent=43 // pred_region
          %s367 = sand.u32 %s118, 1
          %s368 = scalar_lea.sflag [#allocation4], %s367
          %s369 = sand.u32 %s118, 1
          %s370 = smul.addr %s369, 8
          %s371 = scalar_lea.vmem [#allocation5], %s370
          %372 = dma.done %s368, 128
        $region48: #{tpu_custom_call.1} parent=43 // pred_fallthru
          _
      $region44: #{tpu_custom_call.1} parent=5 // pred_fallthru
        _
    $region6: #{tpu_custom_call.1} parent=1 // loop_footer
      %s19 = sadd.s32 1, %s15
    $region7: #{tpu_custom_call.1} parent=1 // loop_footer_branch
      %14 = sbr.rel target = $region3
    $region8: #{tpu_custom_call.1} parent=1 // loop_exit
      _
    %373 = vsyncpa [#allocation3], 1
    %s374 = scalar_lea.sflag [#allocation3], 1
    %375 = vsyncpa %s374, 1
    %376 = vsyncpa [#allocation4], 1
    %s377 = scalar_lea.sflag [#allocation4], 1
    %378 = vsyncpa %s377, 1

</llo_original>
